<compile_context>
chip_gen: v5e
topology: v5e:2x2
jax: 0.10.0
libtpu: 0.0.40
codegen_flags: <defaults>
</compile_context>

<pallas_src>
import functools

import jax
import jax.numpy as jnp
from jax import lax
from jax.experimental import pallas as pl
from jax.experimental.pallas import tpu as pltpu


# ----------------------------------------------------------------------------
# Fused multi-head GAT attention: softmax math issued ONCE across all heads.
# ----------------------------------------------------------------------------
def _fused_attention(h_aug, a_s_all, mask_bias, heads, hidden, n):
    """h_aug  : (N, heads*hidden + heads) f32  = [W_h x | <W_h x_i, a_dst_h> cols]
       a_s_all: (heads, N)                f32  = <W_h x_j, a_src_h>
       mask_bias: (N, N) f32 additive mask (0 for edges incl. self-loop, -1e30 else)
       returns (N, heads*hidden) f32 (lane-concatenated head outputs)."""
    f32, bf16 = jnp.float32, jnp.bfloat16
    base = heads * hidden

    if heads == 1:
        a_d = h_aug[:, base:base + 1]                               # (N, 1)
        a_s = jnp.broadcast_to(a_s_all[0:1, :], (n, n))             # (N, N)
        mask = mask_bias
    else:
        # Stack heads along sublanes -> single fused elementwise/reduction pass.
        a_d = jnp.concatenate(
            [h_aug[:, base + hd:base + hd + 1] for hd in range(heads)], axis=0)
        a_s = jnp.concatenate(
            [jnp.broadcast_to(a_s_all[hd:hd + 1, :], (n, n)) for hd in range(heads)],
            axis=0)                                                 # (heads*N, N)
        mask = jnp.concatenate([mask_bias] * heads, axis=0)         # (heads*N, N)

    e = a_d + a_s                                                   # (heads*N, N)
    e = jnp.where(e > 0, e, 0.2 * e) + mask                         # LeakyReLU(0.2) + mask
    p = jnp.exp(e - jnp.max(e, axis=-1, keepdims=True))
    inv = pl.reciprocal(jnp.sum(p, axis=-1, keepdims=True), approx=True)   # EUP slot
    alpha = (p * inv).astype(bf16)                                  # one cast, all heads

    hh = h_aug[:, :base].astype(bf16)                               # hoisted bf16 cast
    outs = [jnp.dot(alpha[hd * n:(hd + 1) * n, :],
                    hh[:, hd * hidden:(hd + 1) * hidden],
                    preferred_element_type=f32)
            for hd in range(heads)]                                 # per-head MXU dots
    return outs[0] if heads == 1 else jnp.concatenate(outs, axis=-1)


# ----------------------------------------------------------------------------
# Single fused kernel: conv1(+ReLU) -> conv2(+ReLU) -> mean-pool -> lin1 -> ReLU -> lin2
# ----------------------------------------------------------------------------
def _fused_gat_kernel(heads1, hidden, n,
                      x_ref, mask_ref, pool_ref, invcnt_ref,
                      w1_ref, asrc1_ref, b1_ref,
                      w2_ref, asrc2_ref, b2_ref,
                      lw1_ref, lb1_ref, lw2_ref, lb2_ref,
                      out_ref):
    f32, bf16 = jnp.float32, jnp.bfloat16
    nt_dims = (((1,), (1,)), ((), ()))            # A @ B^T without an explicit transpose

    mask_bias = mask_ref[...]                     # (N, N) f32 additive edge mask

    # -------- GATConv 1 (heads=heads1, concat) + ReLU --------
    x = x_ref[...]                                                      # (N, F_in) bf16
    h1_aug = jnp.dot(x, w1_ref[...], preferred_element_type=f32)        # (N, h1*hid + h1)
    a_s1 = lax.dot_general(asrc1_ref[...], x, nt_dims,
                           preferred_element_type=f32)                  # (h1, N)
    h1 = _fused_attention(h1_aug, a_s1, mask_bias, heads1, hidden, n)   # (N, h1*hid) f32
    h1 = jnp.maximum(h1 + b1_ref[...], 0.0).astype(bf16)                # one cast

    # -------- GATConv 2 (heads=1) + ReLU : single dot on the lane-concatenated h1 ------
    h2_aug = jnp.dot(h1, w2_ref[...], preferred_element_type=f32)       # (N, hid + 1)
    a_s2 = lax.dot_general(asrc2_ref[...], h1, nt_dims,
                           preferred_element_type=f32)                  # (1, N)
    h2 = _fused_attention(h2_aug, a_s2, mask_bias, 1, hidden, n)        # (N, hid) f32
    h2 = jnp.maximum(h2 + b2_ref[...], 0.0).astype(bf16)

    # -------- global_mean_pool (exact f32 1/count) + lin1 + ReLU + lin2 --------
    pooled = jnp.dot(pool_ref[...], h2, preferred_element_type=f32) * invcnt_ref[...]
    hid = jnp.dot(pooled.astype(bf16), lw1_ref[...],
                  preferred_element_type=f32) + lb1_ref[...]
    hid = jnp.maximum(hid, 0.0).astype(bf16)
    out_ref[...] = jnp.dot(hid, lw2_ref[...],
                           preferred_element_type=f32) + lb2_ref[...]   # (G, 1)


# ----------------------------------------------------------------------------
# Wrapper: fold attention vectors into weights (f32 folds), densify graph, launch.
# ----------------------------------------------------------------------------
def _prep_gat_weights(w, asrc, adst):
    """w_aug  : (F_in, heads*hidden + heads) bf16 = [W | W_h @ a_dst_h columns]
       asrc_in: (heads, F_in)                bf16 with rows W_h @ a_src_h"""
    heads, hidden = asrc.shape
    adst_cols = [w[:, h * hidden:(h + 1) * hidden] @ adst[h][:, None] for h in range(heads)]
    w_aug = jnp.concatenate([w] + adst_cols, axis=1)
    asrc_in = jnp.stack([w[:, h * hidden:(h + 1) * hidden] @ asrc[h] for h in range(heads)])
    return w_aug.astype(jnp.bfloat16), asrc_in.astype(jnp.bfloat16)


def gat_model_forward(params, x, edge_index, batch, num_graphs):
    n = x.shape[0]
    hidden = params["hidden"]
    heads1 = params["asrc1"].shape[0]

    # Additive attention mask: 0 for edges (adj[dst, src], incl. self-loops), -1e30 else.
    adj = jnp.zeros((n, n), jnp.float32).at[edge_index[1], edge_index[0]].set(1.0)
    adj = jnp.maximum(adj, jnp.eye(n, dtype=jnp.float32))
    mask_bias = jnp.where(adj > 0, 0.0, -1e30).astype(jnp.float32)

    # global_mean_pool: exact 0/1 one-hot for the MXU (bf16) + f32 1/count scaling.
    one_hot = (batch[None, :] == jnp.arange(num_graphs)[:, None]).astype(jnp.float32)
    inv_count = (1.0 / jnp.maximum(one_hot.sum(1, keepdims=True), 1.0)).astype(jnp.float32)
    pool_onehot = one_hot.astype(jnp.bfloat16)

    w1_aug, asrc1_in = _prep_gat_weights(params["w1"], params["asrc1"], params["adst1"])
    w2_aug, asrc2_in = _prep_gat_weights(params["w2"], params["asrc2"], params["adst2"])

    inputs = (x.astype(jnp.bfloat16), mask_bias, pool_onehot, inv_count,
              w1_aug, asrc1_in, params["bias1"],
              w2_aug, asrc2_in, params["bias2"],
              params["lw1"].astype(jnp.bfloat16), params["lb1"],
              params["lw2"].astype(jnp.bfloat16), params["lb2"])

    vmem = pl.BlockSpec(memory_space=pltpu.MemorySpace.VMEM)
    return pl.pallas_call(
        functools.partial(_fused_gat_kernel, heads1, hidden, n),
        out_shape=jax.ShapeDtypeStruct((num_graphs, 1), jnp.float32),
        in_specs=[vmem] * len(inputs),
        out_specs=vmem,
    )(*inputs)


# ----------------------------------------------------------------------------
# Pure-JAX f32 reference (independent math) for the correctness check.
# ----------------------------------------------------------------------------
def _ref_gat_layer(x, w, asrc, adst, bias, adj, heads, f_out):
    h = x @ w
    outs = []
    for hd in range(heads):
        hh = h[:, hd * f_out:(hd + 1) * f_out]
        a_d = jnp.sum(hh * adst[hd], axis=-1, keepdims=True)
        a_s = jnp.sum(hh * asrc[hd], axis=-1)[None, :]
        e = a_d + a_s
        e = jnp.where(e > 0, e, 0.2 * e)
        e = jnp.where(adj > 0, e, -1e30)
        alpha = jax.nn.softmax(e, axis=-1)
        outs.append(alpha @ hh)
    return jnp.maximum(jnp.concatenate(outs, -1) + bias, 0.0)


def _ref_forward(params, x, edge_index, batch, num_graphs):
    n = x.shape[0]
    adj = jnp.zeros((n, n), jnp.float32).at[edge_index[1], edge_index[0]].set(1.0)
    adj = jnp.maximum(adj, jnp.eye(n, dtype=jnp.float32))
    heads1 = params["asrc1"].shape[0]
    h1 = _ref_gat_layer(x, params["w1"], params["asrc1"], params["adst1"],
                        params["bias1"], adj, heads1, params["hidden"])
    h2 = _ref_gat_layer(h1, params["w2"], params["asrc2"], params["adst2"],
                        params["bias2"], adj, 1, params["hidden"])
    one_hot = (batch[None, :] == jnp.arange(num_graphs)[:, None]).astype(jnp.float32)
    pooled = (one_hot @ h2) / jnp.maximum(one_hot.sum(1, keepdims=True), 1.0)
    hid = jnp.maximum(pooled @ params["lw1"] + params["lb1"], 0.0)
    return hid @ params["lw2"] + params["lb2"]


if __name__ == "__main__":
    in_channels, hidden, heads = 8, 16, 2
    nodes_per_graph, num_graphs = 8, 2
    n = nodes_per_graph * num_graphs

    key = jax.random.PRNGKey(0)
    ks = jax.random.split(key, 12)

    params = {
        "hidden": hidden,
        # GATConv 1: in_channels -> hidden, heads=2 (concat)
        "w1": 0.2 * jax.random.normal(ks[0], (in_channels, heads * hidden), jnp.float32),
        "asrc1": 0.2 * jax.random.normal(ks[1], (heads, hidden), jnp.float32),
        "adst1": 0.2 * jax.random.normal(ks[2], (heads, hidden), jnp.float32),
        "bias1": 0.1 * jax.random.normal(ks[3], (1, heads * hidden), jnp.float32),
        # GATConv 2: hidden*heads -> hidden, heads=1
        "w2": 0.2 * jax.random.normal(ks[4], (heads * hidden, hidden), jnp.float32),
        "asrc2": 0.2 * jax.random.normal(ks[5], (1, hidden), jnp.float32),
        "adst2": 0.2 * jax.random.normal(ks[6], (1, hidden), jnp.float32),
        "bias2": 0.1 * jax.random.normal(ks[7], (1, hidden), jnp.float32),
        # lin1: hidden -> hidden // 2 ; lin2: hidden // 2 -> 1  (stored as (in, out))
        "lw1": 0.2 * jax.random.normal(ks[8], (hidden, hidden // 2), jnp.float32),
        "lb1": 0.1 * jax.random.normal(ks[9], (1, hidden // 2), jnp.float32),
        "lw2": 0.2 * jax.random.normal(ks[10], (hidden // 2, 1), jnp.float32),
        "lb2": 0.1 * jax.random.normal(ks[11], (1, 1), jnp.float32),
    }

    # Inputs: node features, ring-graph edges within each graph, batch vector.
    x = jax.random.normal(jax.random.PRNGKey(42), (n, in_channels), jnp.float32)
    src, dst = [], []
    for g in range(num_graphs):
        base = g * nodes_per_graph
        for i in range(nodes_per_graph):
            j = base + i
            k2 = base + (i + 1) % nodes_per_graph
            src += [j, k2]
            dst += [k2, j]
    edge_index = jnp.array([src, dst], dtype=jnp.int32)          # (2, 32)
    batch = jnp.repeat(jnp.arange(num_graphs, dtype=jnp.int32), nodes_per_graph)

    out = gat_model_forward(params, x, edge_index, batch, num_graphs)
    out = jax.block_until_ready(out)

    ref = _ref_forward(params, x, edge_index, batch, num_graphs)
    assert out.shape == (num_graphs, 1)
    # Tolerance covers bf16 MXU operands + approximate-reciprocal softmax vs. f32 ref.
    assert jnp.allclose(out, ref, atol=4e-2, rtol=4e-2), (out, ref)

    print("KERNEL_OK")
</pallas_src>

<mosaic_0001>
module attributes {stable_mosaic.version = 11 : i64} {
  func.func @_fused_gat_kernel(%arg0: memref<16x8xbf16, #tpu.memory_space<vmem>>, %arg1: memref<16x16xf32, #tpu.memory_space<vmem>>, %arg2: memref<2x16xbf16, #tpu.memory_space<vmem>>, %arg3: memref<2x1xf32, #tpu.memory_space<vmem>>, %arg4: memref<8x34xbf16, #tpu.memory_space<vmem>>, %arg5: memref<2x8xbf16, #tpu.memory_space<vmem>>, %arg6: memref<1x32xf32, #tpu.memory_space<vmem>>, %arg7: memref<32x17xbf16, #tpu.memory_space<vmem>>, %arg8: memref<1x32xbf16, #tpu.memory_space<vmem>>, %arg9: memref<1x16xf32, #tpu.memory_space<vmem>>, %arg10: memref<16x8xbf16, #tpu.memory_space<vmem>>, %arg11: memref<1x8xf32, #tpu.memory_space<vmem>>, %arg12: memref<8x1xbf16, #tpu.memory_space<vmem>>, %arg13: memref<1x1xf32, #tpu.memory_space<vmem>>, %arg14: memref<2x1xf32, #tpu.memory_space<vmem>>) attributes {dimension_semantics = [], scalar_prefetch = 0 : i64, scratch_operands = 0 : i64, tpu.core_type = #tpu.core_type<tc>} {
    %c0 = arith.constant 0 : index
    %c0_0 = arith.constant 0 : index
    %0 = vector.load %arg1[%c0, %c0_0] : memref<16x16xf32, #tpu.memory_space<vmem>>, vector<16x16xf32>
    %c0_1 = arith.constant 0 : index
    %c0_2 = arith.constant 0 : index
    %1 = vector.load %arg0[%c0_1, %c0_2] : memref<16x8xbf16, #tpu.memory_space<vmem>>, vector<16x8xbf16>
    %c0_3 = arith.constant 0 : index
    %c0_4 = arith.constant 0 : index
    %2 = vector.load %arg4[%c0_3, %c0_4] : memref<8x34xbf16, #tpu.memory_space<vmem>>, vector<8x34xbf16>
    %cst = arith.constant dense<0.000000e+00> : vector<16x34xf32>
    %3 = tpu.matmul %1, %2, %cst {dimension_numbers = #tpu.dot_dimension_numbers<[1], [0], [0], [1], [0, 0, 1, 1], [], []>} : vector<16x8xbf16>, vector<8x34xbf16>, vector<16x34xf32> -> vector<16x34xf32>
    %c0_5 = arith.constant 0 : index
    %c0_6 = arith.constant 0 : index
    %4 = vector.load %arg5[%c0_5, %c0_6] : memref<2x8xbf16, #tpu.memory_space<vmem>>, vector<2x8xbf16>
    %cst_7 = arith.constant dense<0.000000e+00> : vector<2x16xf32>
    %5 = tpu.matmul %4, %1, %cst_7 {dimension_numbers = #tpu.dot_dimension_numbers<[1], [1], [0], [0], [0, 0, 1, 0], [], []>} : vector<2x8xbf16>, vector<16x8xbf16>, vector<2x16xf32> -> vector<2x16xf32>
    %6 = vector.extract_strided_slice %3 {offsets = [0, 32], sizes = [16, 1], strides = [1, 1]} : vector<16x34xf32> to vector<16x1xf32>
    %7 = vector.extract_strided_slice %3 {offsets = [0, 33], sizes = [16, 1], strides = [1, 1]} : vector<16x34xf32> to vector<16x1xf32>
    %8 = tpu.concatenate %6, %7 in 0 : vector<16x1xf32>, vector<16x1xf32> -> vector<32x1xf32>
    %9 = vector.extract_strided_slice %5 {offsets = [0, 0], sizes = [1, 16], strides = [1, 1]} : vector<2x16xf32> to vector<1x16xf32>
    %10 = vector.shape_cast %9 : vector<1x16xf32> to vector<1x16xf32>
    %11 = vector.broadcast %10 : vector<1x16xf32> to vector<16x16xf32>
    %12 = vector.extract_strided_slice %5 {offsets = [1, 0], sizes = [1, 16], strides = [1, 1]} : vector<2x16xf32> to vector<1x16xf32>
    %13 = vector.shape_cast %12 : vector<1x16xf32> to vector<1x16xf32>
    %14 = vector.broadcast %13 : vector<1x16xf32> to vector<16x16xf32>
    %15 = tpu.concatenate %11, %14 in 0 : vector<16x16xf32>, vector<16x16xf32> -> vector<32x16xf32>
    %16 = tpu.concatenate %0, %0 in 0 : vector<16x16xf32>, vector<16x16xf32> -> vector<32x16xf32>
    %17 = vector.broadcast %8 : vector<32x1xf32> to vector<32x16xf32>
    %18 = arith.addf %17, %15 : vector<32x16xf32>
    %cst_8 = arith.constant 0.000000e+00 : f32
    %19 = vector.broadcast %cst_8 : f32 to vector<32x16xf32>
    %20 = arith.cmpf ogt, %18, %19 : vector<32x16xf32>
    %cst_9 = arith.constant 2.000000e-01 : f32
    %21 = vector.broadcast %cst_9 : f32 to vector<32x16xf32>
    %22 = arith.mulf %21, %18 : vector<32x16xf32>
    %23 = arith.select %20, %18, %22 : vector<32x16xi1>, vector<32x16xf32>
    %24 = arith.addf %23, %16 : vector<32x16xf32>
    %cst_10 = arith.constant dense<0xFF800000> : vector<32xf32>
    %25 = vector.multi_reduction <maximumf>, %24, %cst_10 [1] : vector<32x16xf32> to vector<32xf32>
    %26 = vector.shape_cast %25 : vector<32xf32> to vector<32x1xf32>
    %27 = vector.broadcast %26 : vector<32x1xf32> to vector<32x16xf32>
    %28 = arith.subf %24, %27 : vector<32x16xf32>
    %29 = math.exp %28 : vector<32x16xf32>
    %cst_11 = arith.constant dense<0.000000e+00> : vector<32xf32>
    %30 = vector.multi_reduction <add>, %29, %cst_11 [1] : vector<32x16xf32> to vector<32xf32>
    %31 = vector.shape_cast %30 : vector<32xf32> to vector<32x1xf32>
    %32 = tpu.reciprocal %31 {approx = true} : vector<32x1xf32> -> vector<32x1xf32>
    %33 = vector.broadcast %32 : vector<32x1xf32> to vector<32x16xf32>
    %34 = arith.mulf %29, %33 : vector<32x16xf32>
    %35 = arith.truncf %34 : vector<32x16xf32> to vector<32x16xbf16>
    %36 = vector.extract_strided_slice %3 {offsets = [0, 0], sizes = [16, 32], strides = [1, 1]} : vector<16x34xf32> to vector<16x32xf32>
    %37 = arith.truncf %36 : vector<16x32xf32> to vector<16x32xbf16>
    %38 = vector.extract_strided_slice %35 {offsets = [0, 0], sizes = [16, 16], strides = [1, 1]} : vector<32x16xbf16> to vector<16x16xbf16>
    %39 = vector.extract_strided_slice %37 {offsets = [0, 0], sizes = [16, 16], strides = [1, 1]} : vector<16x32xbf16> to vector<16x16xbf16>
    %cst_12 = arith.constant dense<0.000000e+00> : vector<16x16xf32>
    %40 = tpu.matmul %38, %39, %cst_12 {dimension_numbers = #tpu.dot_dimension_numbers<[1], [0], [0], [1], [0, 0, 1, 1], [], []>} : vector<16x16xbf16>, vector<16x16xbf16>, vector<16x16xf32> -> vector<16x16xf32>
    %41 = vector.extract_strided_slice %35 {offsets = [16, 0], sizes = [16, 16], strides = [1, 1]} : vector<32x16xbf16> to vector<16x16xbf16>
    %42 = vector.extract_strided_slice %37 {offsets = [0, 16], sizes = [16, 16], strides = [1, 1]} : vector<16x32xbf16> to vector<16x16xbf16>
    %cst_13 = arith.constant dense<0.000000e+00> : vector<16x16xf32>
    %43 = tpu.matmul %41, %42, %cst_13 {dimension_numbers = #tpu.dot_dimension_numbers<[1], [0], [0], [1], [0, 0, 1, 1], [], []>} : vector<16x16xbf16>, vector<16x16xbf16>, vector<16x16xf32> -> vector<16x16xf32>
    %44 = tpu.concatenate %40, %43 in 1 : vector<16x16xf32>, vector<16x16xf32> -> vector<16x32xf32>
    %c0_14 = arith.constant 0 : index
    %c0_15 = arith.constant 0 : index
    %45 = vector.load %arg6[%c0_14, %c0_15] : memref<1x32xf32, #tpu.memory_space<vmem>>, vector<1x32xf32>
    %46 = vector.broadcast %45 : vector<1x32xf32> to vector<16x32xf32>
    %47 = arith.addf %44, %46 : vector<16x32xf32>
    %cst_16 = arith.constant 0.000000e+00 : f32
    %48 = vector.broadcast %cst_16 : f32 to vector<16x32xf32>
    %49 = arith.maximumf %47, %48 : vector<16x32xf32>
    %50 = arith.truncf %49 : vector<16x32xf32> to vector<16x32xbf16>
    %c0_17 = arith.constant 0 : index
    %c0_18 = arith.constant 0 : index
    %51 = vector.load %arg7[%c0_17, %c0_18] : memref<32x17xbf16, #tpu.memory_space<vmem>>, vector<32x17xbf16>
    %cst_19 = arith.constant dense<0.000000e+00> : vector<16x17xf32>
    %52 = tpu.matmul %50, %51, %cst_19 {dimension_numbers = #tpu.dot_dimension_numbers<[1], [0], [0], [1], [0, 0, 1, 1], [], []>} : vector<16x32xbf16>, vector<32x17xbf16>, vector<16x17xf32> -> vector<16x17xf32>
    %c0_20 = arith.constant 0 : index
    %c0_21 = arith.constant 0 : index
    %53 = vector.load %arg8[%c0_20, %c0_21] : memref<1x32xbf16, #tpu.memory_space<vmem>>, vector<1x32xbf16>
    %cst_22 = arith.constant dense<0.000000e+00> : vector<1x16xf32>
    %54 = tpu.matmul %53, %50, %cst_22 {dimension_numbers = #tpu.dot_dimension_numbers<[1], [1], [0], [0], [0, 0, 1, 0], [], []>} : vector<1x32xbf16>, vector<16x32xbf16>, vector<1x16xf32> -> vector<1x16xf32>
    %55 = vector.extract_strided_slice %52 {offsets = [0, 16], sizes = [16, 1], strides = [1, 1]} : vector<16x17xf32> to vector<16x1xf32>
    %56 = vector.shape_cast %54 : vector<1x16xf32> to vector<1x16xf32>
    %57 = vector.broadcast %56 : vector<1x16xf32> to vector<16x16xf32>
    %58 = vector.broadcast %55 : vector<16x1xf32> to vector<16x16xf32>
    %59 = arith.addf %58, %57 : vector<16x16xf32>
    %cst_23 = arith.constant 0.000000e+00 : f32
    %60 = vector.broadcast %cst_23 : f32 to vector<16x16xf32>
    %61 = arith.cmpf ogt, %59, %60 : vector<16x16xf32>
    %cst_24 = arith.constant 2.000000e-01 : f32
    %62 = vector.broadcast %cst_24 : f32 to vector<16x16xf32>
    %63 = arith.mulf %62, %59 : vector<16x16xf32>
    %64 = arith.select %61, %59, %63 : vector<16x16xi1>, vector<16x16xf32>
    %65 = arith.addf %64, %0 : vector<16x16xf32>
    %cst_25 = arith.constant dense<0xFF800000> : vector<16xf32>
    %66 = vector.multi_reduction <maximumf>, %65, %cst_25 [1] : vector<16x16xf32> to vector<16xf32>
    %67 = vector.shape_cast %66 : vector<16xf32> to vector<16x1xf32>
    %68 = vector.broadcast %67 : vector<16x1xf32> to vector<16x16xf32>
    %69 = arith.subf %65, %68 : vector<16x16xf32>
    %70 = math.exp %69 : vector<16x16xf32>
    %cst_26 = arith.constant dense<0.000000e+00> : vector<16xf32>
    %71 = vector.multi_reduction <add>, %70, %cst_26 [1] : vector<16x16xf32> to vector<16xf32>
    %72 = vector.shape_cast %71 : vector<16xf32> to vector<16x1xf32>
    %73 = tpu.reciprocal %72 {approx = true} : vector<16x1xf32> -> vector<16x1xf32>
    %74 = vector.broadcast %73 : vector<16x1xf32> to vector<16x16xf32>
    %75 = arith.mulf %70, %74 : vector<16x16xf32>
    %76 = arith.truncf %75 : vector<16x16xf32> to vector<16x16xbf16>
    %77 = vector.extract_strided_slice %52 {offsets = [0, 0], sizes = [16, 16], strides = [1, 1]} : vector<16x17xf32> to vector<16x16xf32>
    %78 = arith.truncf %77 : vector<16x16xf32> to vector<16x16xbf16>
    %cst_27 = arith.constant dense<0.000000e+00> : vector<16x16xf32>
    %79 = tpu.matmul %76, %78, %cst_27 {dimension_numbers = #tpu.dot_dimension_numbers<[1], [0], [0], [1], [0, 0, 1, 1], [], []>} : vector<16x16xbf16>, vector<16x16xbf16>, vector<16x16xf32> -> vector<16x16xf32>
    %c0_28 = arith.constant 0 : index
    %c0_29 = arith.constant 0 : index
    %80 = vector.load %arg9[%c0_28, %c0_29] : memref<1x16xf32, #tpu.memory_space<vmem>>, vector<1x16xf32>
    %81 = vector.broadcast %80 : vector<1x16xf32> to vector<16x16xf32>
    %82 = arith.addf %79, %81 : vector<16x16xf32>
    %cst_30 = arith.constant 0.000000e+00 : f32
    %83 = vector.broadcast %cst_30 : f32 to vector<16x16xf32>
    %84 = arith.maximumf %82, %83 : vector<16x16xf32>
    %85 = arith.truncf %84 : vector<16x16xf32> to vector<16x16xbf16>
    %c0_31 = arith.constant 0 : index
    %c0_32 = arith.constant 0 : index
    %86 = vector.load %arg2[%c0_31, %c0_32] : memref<2x16xbf16, #tpu.memory_space<vmem>>, vector<2x16xbf16>
    %cst_33 = arith.constant dense<0.000000e+00> : vector<2x16xf32>
    %87 = tpu.matmul %86, %85, %cst_33 {dimension_numbers = #tpu.dot_dimension_numbers<[1], [0], [0], [1], [0, 0, 1, 1], [], []>} : vector<2x16xbf16>, vector<16x16xbf16>, vector<2x16xf32> -> vector<2x16xf32>
    %c0_34 = arith.constant 0 : index
    %c0_35 = arith.constant 0 : index
    %88 = vector.load %arg3[%c0_34, %c0_35] : memref<2x1xf32, #tpu.memory_space<vmem>>, vector<2x1xf32>
    %89 = vector.broadcast %88 : vector<2x1xf32> to vector<2x16xf32>
    %90 = arith.mulf %87, %89 : vector<2x16xf32>
    %91 = arith.truncf %90 : vector<2x16xf32> to vector<2x16xbf16>
    %c0_36 = arith.constant 0 : index
    %c0_37 = arith.constant 0 : index
    %92 = vector.load %arg10[%c0_36, %c0_37] : memref<16x8xbf16, #tpu.memory_space<vmem>>, vector<16x8xbf16>
    %cst_38 = arith.constant dense<0.000000e+00> : vector<2x8xf32>
    %93 = tpu.matmul %91, %92, %cst_38 {dimension_numbers = #tpu.dot_dimension_numbers<[1], [0], [0], [1], [0, 0, 1, 1], [], []>} : vector<2x16xbf16>, vector<16x8xbf16>, vector<2x8xf32> -> vector<2x8xf32>
    %c0_39 = arith.constant 0 : index
    %c0_40 = arith.constant 0 : index
    %94 = vector.load %arg11[%c0_39, %c0_40] : memref<1x8xf32, #tpu.memory_space<vmem>>, vector<1x8xf32>
    %95 = vector.broadcast %94 : vector<1x8xf32> to vector<2x8xf32>
    %96 = arith.addf %93, %95 : vector<2x8xf32>
    %cst_41 = arith.constant 0.000000e+00 : f32
    %97 = vector.broadcast %cst_41 : f32 to vector<2x8xf32>
    %98 = arith.maximumf %96, %97 : vector<2x8xf32>
    %99 = arith.truncf %98 : vector<2x8xf32> to vector<2x8xbf16>
    %c0_42 = arith.constant 0 : index
    %c0_43 = arith.constant 0 : index
    %100 = vector.load %arg12[%c0_42, %c0_43] : memref<8x1xbf16, #tpu.memory_space<vmem>>, vector<8x1xbf16>
    %cst_44 = arith.constant dense<0.000000e+00> : vector<2x1xf32>
    %101 = tpu.matmul %99, %100, %cst_44 {dimension_numbers = #tpu.dot_dimension_numbers<[1], [0], [0], [1], [0, 0, 1, 1], [], []>} : vector<2x8xbf16>, vector<8x1xbf16>, vector<2x1xf32> -> vector<2x1xf32>
    %c0_45 = arith.constant 0 : index
    %c0_46 = arith.constant 0 : index
    %102 = vector.load %arg13[%c0_45, %c0_46] : memref<1x1xf32, #tpu.memory_space<vmem>>, vector<1x1xf32>
    %103 = vector.broadcast %102 : vector<1x1xf32> to vector<2x1xf32>
    %104 = arith.addf %101, %103 : vector<2x1xf32>
    %c0_47 = arith.constant 0 : index
    %c0_48 = arith.constant 0 : index
    %105 = vector.load %arg14[%c0_47, %c0_48] : memref<2x1xf32, #tpu.memory_space<vmem>>, vector<2x1xf32>
    tpu.vector_store %arg14[%c0_47, %c0_48], %104 {strides = array<i32>} : memref<2x1xf32, #tpu.memory_space<vmem>>, vector<2x1xf32>,
    return
  }
}

</mosaic_0001>

<llo_original>
// kernel: tpu_custom_call.1
$region0: #{tpu_custom_call.1}
  #allocation0 [shape = 'u32[]', space=smem, size = 0x4, offset = 0x4, fixed_abs, tag = 'smem constant byte address 0x4 - core index']
  #allocation1 [shape = 'u32[72,128]{1,0:T(1,128)}', space=vmem, size = 0x9000, scoped, tag = 'internal scratch']
  #allocation2 [shape = 'f32[1,1]{1,0:T(1,128)S(1)}', space=vmem, size = 0x200, scoped, tag = 'scoped memory for tpu_custom_call.1']
  %s0 = inlined_call_operand.vmem [shape: bf16[16,8], index: 0, kind: input, shape index: {}]
  %s1 = inlined_call_operand.vmem [shape: f32[16,16], index: 1, kind: input, shape index: {}]
  %s2 = inlined_call_operand.vmem [shape: bf16[2,16], index: 2, kind: input, shape index: {}]
  %s3 = inlined_call_operand.vmem [shape: f32[2,1], index: 3, kind: input, shape index: {}]
  %s4 = inlined_call_operand.vmem [shape: bf16[8,34], index: 4, kind: input, shape index: {}]
  %s5 = inlined_call_operand.vmem [shape: bf16[2,8], index: 5, kind: input, shape index: {}]
  %s6 = inlined_call_operand.vmem [shape: f32[1,32], index: 6, kind: input, shape index: {}]
  %s7 = inlined_call_operand.vmem [shape: bf16[32,17], index: 7, kind: input, shape index: {}]
  %s8 = inlined_call_operand.vmem [shape: bf16[1,32], index: 8, kind: input, shape index: {}]
  %s9 = inlined_call_operand.vmem [shape: f32[1,16], index: 9, kind: input, shape index: {}]
  %s10 = inlined_call_operand.vmem [shape: bf16[16,8], index: 10, kind: input, shape index: {}]
  %s11 = inlined_call_operand.vmem [shape: f32[1,8], index: 11, kind: input, shape index: {}]
  %s12 = inlined_call_operand.vmem [shape: bf16[8,1], index: 12, kind: input, shape index: {}]
  %s13 = inlined_call_operand.<no memory space> [shape: f32[1,1], index: 13, kind: input, shape index: {}]
  %s14 = inlined_call_operand.vmem [shape: f32[2,1], index: 14, kind: output, shape index: {}]
  %s15 = sld [smem:[#allocation0]]
  $region66: #{tpu_custom_call.1} parent=0
    _
  %s17 = ssub.s32 1, %s15
  %s18 = scalar_select 0, %s17, %s15
  %v19 = vstv %s13
  %20 = vst [vmem:[#allocation2] sm:$0x1] %v19
  // Predicated region
  $region2: #{tpu_custom_call.1} parent=0 // pred_check
    _
  $region3: #{tpu_custom_call.1} parent=0 // pred_check_branch
    %22 = sbr.rel (0) target = $region5
  $region4: #{tpu_custom_call.1} parent=0 // pred_region
    _
  $region5: #{tpu_custom_call.1} parent=0 // pred_fallthru
    _
  // Predicated region
  $region6: #{tpu_custom_call.1} parent=0 // pred_check
    _
  $region7: #{tpu_custom_call.1} parent=0 // pred_check_branch
    %24 = sbr.rel (0) target = $region9
  $region8: #{tpu_custom_call.1} parent=0 // pred_region
    _
  $region9: #{tpu_custom_call.1} parent=0 // pred_fallthru
    _
  // Predicated region
  $region10: #{tpu_custom_call.1} parent=0 // pred_check
    _
  $region11: #{tpu_custom_call.1} parent=0 // pred_check_branch
    %26 = sbr.rel (0) target = $region13
  $region12: #{tpu_custom_call.1} parent=0 // pred_region
    _
  $region13: #{tpu_custom_call.1} parent=0 // pred_fallthru
    _
  // Predicated region
  $region14: #{tpu_custom_call.1} parent=0 // pred_check
    _
  $region15: #{tpu_custom_call.1} parent=0 // pred_check_branch
    %28 = sbr.rel (0) target = $region17
  $region16: #{tpu_custom_call.1} parent=0 // pred_region
    _
  $region17: #{tpu_custom_call.1} parent=0 // pred_fallthru
    _
  // Predicated region
  $region18: #{tpu_custom_call.1} parent=0 // pred_check
    _
  $region19: #{tpu_custom_call.1} parent=0 // pred_check_branch
    %30 = sbr.rel (0) target = $region21
  $region20: #{tpu_custom_call.1} parent=0 // pred_region
    _
  $region21: #{tpu_custom_call.1} parent=0 // pred_fallthru
    _
  // Predicated region
  $region22: #{tpu_custom_call.1} parent=0 // pred_check
    _
  $region23: #{tpu_custom_call.1} parent=0 // pred_check_branch
    %32 = sbr.rel (0) target = $region25
  $region24: #{tpu_custom_call.1} parent=0 // pred_region
    _
  $region25: #{tpu_custom_call.1} parent=0 // pred_fallthru
    _
  // Predicated region
  $region26: #{tpu_custom_call.1} parent=0 // pred_check
    _
  $region27: #{tpu_custom_call.1} parent=0 // pred_check_branch
    %34 = sbr.rel (0) target = $region29
  $region28: #{tpu_custom_call.1} parent=0 // pred_region
    _
  $region29: #{tpu_custom_call.1} parent=0 // pred_fallthru
    _
  // Predicated region
  $region30: #{tpu_custom_call.1} parent=0 // pred_check
    _
  $region31: #{tpu_custom_call.1} parent=0 // pred_check_branch
    %36 = sbr.rel (0) target = $region33
  $region32: #{tpu_custom_call.1} parent=0 // pred_region
    _
  $region33: #{tpu_custom_call.1} parent=0 // pred_fallthru
    _
  // Predicated region
  $region34: #{tpu_custom_call.1} parent=0 // pred_check
    _
  $region35: #{tpu_custom_call.1} parent=0 // pred_check_branch
    %38 = sbr.rel (0) target = $region37
  $region36: #{tpu_custom_call.1} parent=0 // pred_region
    _
  $region37: #{tpu_custom_call.1} parent=0 // pred_fallthru
    _
  // Predicated region
  $region38: #{tpu_custom_call.1} parent=0 // pred_check
    _
  $region39: #{tpu_custom_call.1} parent=0 // pred_check_branch
    %40 = sbr.rel (0) target = $region41
  $region40: #{tpu_custom_call.1} parent=0 // pred_region
    _
  $region41: #{tpu_custom_call.1} parent=0 // pred_fallthru
    _
  // Predicated region
  $region42: #{tpu_custom_call.1} parent=0 // pred_check
    _
  $region43: #{tpu_custom_call.1} parent=0 // pred_check_branch
    %42 = sbr.rel (0) target = $region45
  $region44: #{tpu_custom_call.1} parent=0 // pred_region
    _
  $region45: #{tpu_custom_call.1} parent=0 // pred_fallthru
    _
  // Predicated region
  $region46: #{tpu_custom_call.1} parent=0 // pred_check
    _
  $region47: #{tpu_custom_call.1} parent=0 // pred_check_branch
    %44 = sbr.rel (0) target = $region49
  $region48: #{tpu_custom_call.1} parent=0 // pred_region
    _
  $region49: #{tpu_custom_call.1} parent=0 // pred_fallthru
    _
  // Predicated region
  $region50: #{tpu_custom_call.1} parent=0 // pred_check
    _
  $region51: #{tpu_custom_call.1} parent=0 // pred_check_branch
    %46 = sbr.rel (0) target = $region53
  $region52: #{tpu_custom_call.1} parent=0 // pred_region
    _
  $region53: #{tpu_custom_call.1} parent=0 // pred_fallthru
    _
  // Predicated region
  $region54: #{tpu_custom_call.1} parent=0 // pred_check
    _
  $region55: #{tpu_custom_call.1} parent=0 // pred_check_branch
    %48 = sbr.rel (0) target = $region57
  $region56: #{tpu_custom_call.1} parent=0 // pred_region
    _
  $region57: #{tpu_custom_call.1} parent=0 // pred_fallthru
    _
  %v50 = vld [vmem:[%s1] sm:$0xff]
  %v51 = vld [vmem:[%s1 + $0x8] sm:$0xff]
  %v52 = vld [vmem:[%s0] sm:$0xf]
  %v53 = vld [vmem:[%s0 + $0x4] sm:$0xf]
  %v54 = vld [vmem:[%s4] sm:$0xf]
  %v57 = vunpack.c.l.b16 %v52
  %v58 = vunpack.c.l.b16 %v53
  %v59 = vpack.c.b16 %v58, %v57
  %vm60 = vcmask 64512
  %v62 = vsel %vm60, %v59, 0
  %vm64 = vcmask 1043456
  %v66 = vsel %vm64, %v54, 0
  %68 = vmatpush.bf16.msra.mxu0 0
  %69 = vmatpush.bf16.msra.mxu0 0
  %70 = vmatpush.bf16.msra.mxu0 0
  %71 = vmatpush.bf16.msra.mxu0 0
  %72 = vmatpush.bf16.msra.mxu0 0
  %73 = vmatpush.bf16.msra.mxu0 0
  %74 = vmatpush.bf16.msra.mxu0 0
  %75 = vmatpush.bf16.msra.mxu0 %v66
  %76 = vmatmul.bf16.gmra.mxu0 %v62
  %v77 = vpop.f32.mrf.mxu0
  %v78 = vadd.f32 0.0, %v77
  %v79 = vpop.f32.mrf.mxu0
  %v80 = vadd.f32 0.0, %v79
  %81 = vdwg.mxu0
  %v82 = vld [vmem:[%s5] sm:$0x1]
  %v84 = vsel %vm60, %v82, 0
  %86 = vmatpush.bf16.xpose.msra.mxu0 0
  %87 = vmatpush.bf16.xpose.msra.mxu0 0
  %88 = vmatpush.bf16.xpose.msra.mxu0 0
  %89 = vmatpush.bf16.xpose.msra.mxu0 0
  %90 = vmatpush.bf16.xpose.msra.mxu0 0
  %91 = vmatpush.bf16.xpose.msra.mxu0 0
  %92 = vmatpush.bf16.xpose.msra.mxu0 0
  %93 = vmatpush.bf16.xpose.msra.mxu0 %v62
  %94 = vmatmul.bf16.gmra.mxu0 %v84
  %v95 = vpop.f32.mrf.mxu0
  %v96 = vadd.f32 0.0, %v95
  %v97 = vpop.f32.mrf.mxu0
  %98 = vdwg.mxu0
  %101 = vrot.lane.b32.xlu0 %v78, 127
  %v102 = vpop.permute.xlu0 %101
  %103 = vrot.lane.b32.xlu0 %v80, 127
  %v104 = vpop.permute.xlu0 %103
  %v105 = vperm.slane %v96, 0
  %v106 = vperm.slane %v96, 1
  %107 = vset.pattern.permute.xlu0 32
  %108 = vperm.xlu0 %107, %v78
  %v109 = vpop.permute.xlu0 %108
  %111 = vset.pattern.permute.xlu0 32
  %112 = vperm.xlu0 %111, %v80
  %v113 = vpop.permute.xlu0 %112
  %115 = vset.pattern.permute.xlu0 32
  %116 = vperm.xlu0 %115, %v102
  %v117 = vpop.permute.xlu0 %116
  %119 = vset.pattern.permute.xlu0 32
  %120 = vperm.xlu0 %119, %v104
  %v121 = vpop.permute.xlu0 %120
  %v123 = vadd.f32 %v109, %v105
  %v124 = vadd.f32 %v113, %v105
  %v125 = vadd.f32 %v117, %v106
  %v126 = vadd.f32 %v121, %v106
  %vm127 = vcmp.gt.f32.partialorder %v123, 0.0
  %vm128 = vcmp.gt.f32.partialorder %v124, 0.0
  %vm129 = vcmp.gt.f32.partialorder %v125, 0.0
  %vm130 = vcmp.gt.f32.partialorder %v126, 0.0
  %v131 = vmul.f32 %v123, 0.2
  %v132 = vmul.f32 %v124, 0.2
  %v133 = vmul.f32 %v125, 0.2
  %v134 = vmul.f32 %v126, 0.2
  %v135 = vsel %vm127, %v123, %v131
  %v136 = vsel %vm128, %v124, %v132
  %v137 = vsel %vm129, %v125, %v133
  %v138 = vsel %vm130, %v126, %v134
  %v139 = vadd.f32 %v135, %v50
  %v140 = vadd.f32 %v136, %v51
  %v141 = vadd.f32 %v137, %v50
  %v142 = vadd.f32 %v138, %v51
  %vm143 = vcmask 130048
  %v144 = vsel %vm143, %v139, -inf
  %145 = vmax.xlane.f32.xlu0 %v144
  %v146 = vpop.xlane.xlu0 %145
  %v147 = vsel %vm143, %v140, -inf
  %148 = vmax.xlane.f32.xlu0 %v147
  %v149 = vpop.xlane.xlu0 %148
  %v150 = vsel %vm143, %v141, -inf
  %151 = vmax.xlane.f32.xlu0 %v150
  %v152 = vpop.xlane.xlu0 %151
  %v153 = vsel %vm143, %v142, -inf
  %154 = vmax.xlane.f32.xlu0 %v153
  %v155 = vpop.xlane.xlu0 %154
  %v156 = vsub.f32 %v139, %v146
  %v157 = vsub.f32 %v140, %v149
  %v158 = vsub.f32 %v141, %v152
  %v159 = vsub.f32 %v142, %v155
  %v160 = vmul.f32 %v156, 1.442695
  %v161 = vpow.pop %v160
  %v162 = vmul.f32 %v157, 1.442695
  %v163 = vpow.pop %v162
  %v164 = vmul.f32 %v158, 1.442695
  %v165 = vpow.pop %v164
  %v166 = vmul.f32 %v159, 1.442695
  %v167 = vpow.pop %v166
  %v168 = vsel %vm143, %v161, 0.0
  %169 = vadd.xlane.f32.xlu0 %v168
  %v170 = vpop.xlane.xlu0 %169
  %v171 = vsel %vm143, %v163, 0.0
  %172 = vadd.xlane.f32.xlu0 %v171
  %v173 = vpop.xlane.xlu0 %172
  %v174 = vsel %vm143, %v165, 0.0
  %175 = vadd.xlane.f32.xlu0 %v174
  %v176 = vpop.xlane.xlu0 %175
  %v177 = vsel %vm143, %v167, 0.0
  %178 = vadd.xlane.f32.xlu0 %v177
  %v179 = vpop.xlane.xlu0 %178
  %v180 = vrcp.pop %v170
  %v181 = vrcp.pop %v173
  %v182 = vrcp.pop %v176
  %v183 = vrcp.pop %v179
  %v184 = vmul.f32 %v161, %v180
  %v185 = vmul.f32 %v163, %v181
  %v186 = vmul.f32 %v165, %v182
  %v187 = vmul.f32 %v167, %v183
  %v188 = vpack.c.bf16 %v184, %v184
  %v189 = vpack.c.bf16 %v185, %v185
  %v190 = vpack.c.bf16 %v186, %v186
  %v191 = vpack.c.bf16 %v187, %v187
  %v192 = vpack.c.bf16 %v78, %v78
  %v193 = vpack.c.bf16 %v80, %v80
  %v196 = vunpack.c.l.b16 %v188
  %v197 = vunpack.c.l.b16 %v189
  %v198 = vpack.c.b16 %v197, %v196
  %v201 = vunpack.c.l.b16 %v192
  %v202 = vunpack.c.l.b16 %v193
  %v203 = vpack.c.b16 %v202, %v201
  %v206 = vsel %vm143, %v198, 0
  %208 = vmatpush.bf16.msra.mxu0 0
  %209 = vmatpush.bf16.msra.mxu0 0
  %210 = vmatpush.bf16.msra.mxu0 0
  %211 = vmatpush.bf16.msra.mxu0 0
  %212 = vmatpush.bf16.msra.mxu0 0
  %213 = vmatpush.bf16.msra.mxu0 0
  %214 = vmatpush.bf16.msra.mxu0 0
  %215 = vmatpush.bf16.msra.mxu0 %v203
  %216 = vmatmul.bf16.gmra.mxu0 %v206
  %v217 = vpop.f32.mrf.mxu0
  %v218 = vadd.f32 0.0, %v217
  %v219 = vpop.f32.mrf.mxu0
  %v220 = vadd.f32 0.0, %v219
  %221 = vdwg.mxu0
  %v224 = vunpack.c.l.b16 %v190
  %v225 = vunpack.c.l.b16 %v191
  %v226 = vpack.c.b16 %v225, %v224
  %227 = vrot.lane.b32.xlu0 %v203, 112
  %v228 = vpop.permute.xlu0 %227
  %v231 = vsel %vm143, %v226, 0
  %233 = vmatpush.bf16.msra.mxu0 0
  %234 = vmatpush.bf16.msra.mxu0 0
  %235 = vmatpush.bf16.msra.mxu0 0
  %236 = vmatpush.bf16.msra.mxu0 0
  %237 = vmatpush.bf16.msra.mxu0 0
  %238 = vmatpush.bf16.msra.mxu0 0
  %239 = vmatpush.bf16.msra.mxu0 0
  %240 = vmatpush.bf16.msra.mxu0 %v228
  %241 = vmatmul.bf16.gmra.mxu0 %v231
  %v242 = vpop.f32.mrf.mxu0
  %v243 = vadd.f32 0.0, %v242
  %v244 = vpop.f32.mrf.mxu0
  %v245 = vadd.f32 0.0, %v244
  %246 = vdwg.mxu0
  %249 = vrot.lane.b32.xlu0 %v243, 16
  %v250 = vpop.permute.xlu0 %249
  %251 = vrot.lane.b32.xlu0 %v245, 16
  %v252 = vpop.permute.xlu0 %251
  %v255 = vsel %vm143, %v218, %v250
  %v256 = vsel %vm143, %v220, %v252
  %v257 = vld [vmem:[%s6] sm:$0x1]
  %v259 = vperm.slane %v257, 0
  %v261 = vadd.f32 %v255, %v259
  %v262 = vadd.f32 %v256, %v259
  %v263 = vmax.f32 %v261, 0.0
  %v264 = vmax.f32 %v262, 0.0
  %v265 = vpack.c.bf16 %v264, %v263
  %v266 = vld [vmem:[%s7] sm:$0xf]
  %v267 = vld [vmem:[%s7 + $0x4] sm:$0xf]
  %v268 = vld [vmem:[%s7 + $0x8] sm:$0xf]
  %v269 = vld [vmem:[%s7 + $0xc] sm:$0xf]
  %v274 = vunpack.c.l.b16 %v266
  %v275 = vunpack.c.l.b16 %v267
  %v276 = vunpack.c.l.b16 %v268
  %v277 = vunpack.c.l.b16 %v269
  %v278 = vpack.c.b16 %v275, %v274
  %v279 = vpack.c.b16 %v277, %v276
  %vm282 = vcmask 261120
  %v284 = vsel %vm282, %v265, 0
  %286 = vmatpush.bf16.msra.mxu0 0
  %287 = vmatpush.bf16.msra.mxu0 0
  %288 = vmatpush.bf16.msra.mxu0 0
  %289 = vmatpush.bf16.msra.mxu0 0
  %290 = vmatpush.bf16.msra.mxu0 0
  %291 = vmatpush.bf16.msra.mxu0 0
  %292 = vmatpush.bf16.msra.mxu0 %v279
  %293 = vmatpush.bf16.msra.mxu0 %v278
  %294 = vmatmul.bf16.gmra.mxu0 %v284
  %v295 = vpop.f32.mrf.mxu0
  %v296 = vadd.f32 0.0, %v295
  %v297 = vpop.f32.mrf.mxu0
  %v298 = vadd.f32 0.0, %v297
  %299 = vdwg.mxu0
  %v300 = vld [vmem:[%s8] sm:$0x1]
  %v302 = vsel %vm282, %v300, 0
  %304 = vmatpush.bf16.xpose.msra.mxu0 0
  %305 = vmatpush.bf16.xpose.msra.mxu0 0
  %306 = vmatpush.bf16.xpose.msra.mxu0 0
  %307 = vmatpush.bf16.xpose.msra.mxu0 0
  %308 = vmatpush.bf16.xpose.msra.mxu0 0
  %309 = vmatpush.bf16.xpose.msra.mxu0 0
  %310 = vmatpush.bf16.xpose.msra.mxu0 0
  %311 = vmatpush.bf16.xpose.msra.mxu0 %v284
  %312 = vmatmul.bf16.gmra.mxu0 %v302
  %v313 = vpop.f32.mrf.mxu0
  %v314 = vadd.f32 0.0, %v313
  %v315 = vpop.f32.mrf.mxu0
  %316 = vdwg.mxu0
  %v317 = vperm.slane %v314, 0
  %319 = vset.pattern.permute.xlu0 16
  %320 = vperm.xlu0 %319, %v296
  %v321 = vpop.permute.xlu0 %320
  %324 = vset.pattern.permute.xlu0 16
  %325 = vperm.xlu0 %324, %v298
  %v326 = vpop.permute.xlu0 %325
  %v328 = vadd.f32 %v321, %v317
  %v329 = vadd.f32 %v326, %v317
  %vm330 = vcmp.gt.f32.partialorder %v328, 0.0
  %vm331 = vcmp.gt.f32.partialorder %v329, 0.0
  %v332 = vmul.f32 %v328, 0.2
  %v333 = vmul.f32 %v329, 0.2
  %v334 = vsel %vm330, %v328, %v332
  %v335 = vsel %vm331, %v329, %v333
  %v336 = vadd.f32 %v334, %v50
  %v337 = vadd.f32 %v335, %v51
  %v338 = vsel %vm143, %v336, -inf
  %339 = vmax.xlane.f32.xlu0 %v338
  %v340 = vpop.xlane.xlu0 %339
  %v341 = vsel %vm143, %v337, -inf
  %342 = vmax.xlane.f32.xlu0 %v341
  %v343 = vpop.xlane.xlu0 %342
  %v344 = vsub.f32 %v336, %v340
  %v345 = vsub.f32 %v337, %v343
  %v346 = vmul.f32 %v344, 1.442695
  %v347 = vpow.pop %v346
  %v348 = vmul.f32 %v345, 1.442695
  %v349 = vpow.pop %v348
  %v350 = vsel %vm143, %v347, 0.0
  %351 = vadd.xlane.f32.xlu0 %v350
  %v352 = vpop.xlane.xlu0 %351
  %v353 = vsel %vm143, %v349, 0.0
  %354 = vadd.xlane.f32.xlu0 %v353
  %v355 = vpop.xlane.xlu0 %354
  %v356 = vrcp.pop %v352
  %v357 = vrcp.pop %v355
  %v358 = vmul.f32 %v347, %v356
  %v359 = vmul.f32 %v349, %v357
  %v360 = vpack.c.bf16 %v359, %v358
  %v361 = vpack.c.bf16 %v298, %v296
  %v362 = vld [vmem:[%s9] sm:$0x1]
  %v364 = vperm.slane %v362, 0
  %v367 = vsel %vm143, %v360, 0
  %369 = vmatpush.bf16.msra.mxu0 0
  %370 = vmatpush.bf16.msra.mxu0 0
  %371 = vmatpush.bf16.msra.mxu0 0
  %372 = vmatpush.bf16.msra.mxu0 0
  %373 = vmatpush.bf16.msra.mxu0 0
  %374 = vmatpush.bf16.msra.mxu0 0
  %375 = vmatpush.bf16.msra.mxu0 0
  %376 = vmatpush.bf16.msra.mxu0 %v361
  %377 = vmatmul.bf16.gmra.mxu0 %v367
  %v378 = vpop.f32.mrf.mxu0
  %v379 = vadd.f32 %v364, %v378
  %v380 = vpop.f32.mrf.mxu0
  %v381 = vadd.f32 %v364, %v380
  %382 = vdwg.mxu0
  %v383 = vmax.f32 %v379, 0.0
  %v384 = vmax.f32 %v381, 0.0
  %v385 = vpack.c.bf16 %v384, %v383
  %v386 = vld [vmem:[%s2] sm:$0x1]
  %v388 = vsel %vm143, %v386, 0
  %390 = vmatpush.bf16.msra.mxu0 0
  %391 = vmatpush.bf16.msra.mxu0 0
  %392 = vmatpush.bf16.msra.mxu0 0
  %393 = vmatpush.bf16.msra.mxu0 0
  %394 = vmatpush.bf16.msra.mxu0 0
  %395 = vmatpush.bf16.msra.mxu0 0
  %396 = vmatpush.bf16.msra.mxu0 0
  %397 = vmatpush.bf16.msra.mxu0 %v385
  %398 = vmatmul.bf16.gmra.mxu0 %v388
  %v399 = vpop.f32.mrf.mxu0
  %v400 = vadd.f32 0.0, %v399
  %v401 = vpop.f32.mrf.mxu0
  %402 = vdwg.mxu0
  %v403 = vld [vmem:[%s3] sm:$0x3]
  %405 = vset.pattern.permute.xlu0 0
  %406 = vperm.xlu0 %405, %v403
  %v407 = vpop.permute.xlu0 %406
  %v409 = vmul.f32 %v400, %v407
  %v410 = vpack.c.bf16 %v409, %v409
  %v411 = vld [vmem:[%s10] sm:$0xf]
  %v412 = vld [vmem:[%s10 + $0x4] sm:$0xf]
  %v413 = vld [vmem:[%s11] sm:$0x1]
  %v415 = vperm.slane %v413, 0
  %v419 = vunpack.c.l.b16 %v411
  %v420 = vunpack.c.l.b16 %v412
  %v421 = vpack.c.b16 %v420, %v419
  %v424 = vsel %vm143, %v410, 0
  %426 = vmatpush.bf16.msra.mxu0 0
  %427 = vmatpush.bf16.msra.mxu0 0
  %428 = vmatpush.bf16.msra.mxu0 0
  %429 = vmatpush.bf16.msra.mxu0 0
  %430 = vmatpush.bf16.msra.mxu0 0
  %431 = vmatpush.bf16.msra.mxu0 0
  %432 = vmatpush.bf16.msra.mxu0 0
  %433 = vmatpush.bf16.msra.mxu0 %v421
  %434 = vmatmul.bf16.gmra.mxu0 %v424
  %v435 = vpop.f32.mrf.mxu0
  %v436 = vadd.f32 %v415, %v435
  %v437 = vpop.f32.mrf.mxu0
  %438 = vdwg.mxu0
  %v439 = vmax.f32 %v436, 0.0
  %v440 = vpack.c.bf16 %v439, %v439
  %v441 = vld [vmem:[%s12] sm:$0xf]
  %v442 = vld [vmem:[#allocation2] sm:$0x1]
  %v444 = vperm.slane %v442, 0
  %v447 = vsel %vm60, %v440, 0
  %v450 = vsel %vm64, %v441, 0
  %452 = vmatpush.bf16.msra.mxu0 0
  %453 = vmatpush.bf16.msra.mxu0 0
  %454 = vmatpush.bf16.msra.mxu0 0
  %455 = vmatpush.bf16.msra.mxu0 0
  %456 = vmatpush.bf16.msra.mxu0 0
  %457 = vmatpush.bf16.msra.mxu0 0
  %458 = vmatpush.bf16.msra.mxu0 0
  %459 = vmatpush.bf16.msra.mxu0 %v450
  %460 = vmatmul.bf16.gmra.mxu0 %v447
  %v461 = vpop.f32.mrf.mxu0
  %v462 = vadd.f32 %v444, %v461
  %v463 = vpop.f32.mrf.mxu0
  %464 = vdwg.mxu0
  %vm465 = vcmask 1024
  %466 = vst.msk [vmem:[%s14] sm:$0x3] %vm465, %v462
  // Predicated region
  $region58: #{tpu_custom_call.1} parent=0 // pred_check
    _
  $region59: #{tpu_custom_call.1} parent=0 // pred_check_branch
    %468 = sbr.rel (0) target = $region61
  $region60: #{tpu_custom_call.1} parent=0 // pred_region
    _
  $region61: #{tpu_custom_call.1} parent=0 // pred_fallthru
    _
  // Predicated region
  $region62: #{tpu_custom_call.1} parent=0 // pred_check
    _
  $region63: #{tpu_custom_call.1} parent=0 // pred_check_branch
    %470 = sbr.rel (0) target = $region65
  $region64: #{tpu_custom_call.1} parent=0 // pred_region
    _
  $region65: #{tpu_custom_call.1} parent=0 // pred_fallthru
    _

</llo_original>
